<compile_context>
chip_gen: v5e
topology: v5e:2x2
jax: 0.10.0
libtpu: 0.0.40
codegen_flags: <defaults>
</compile_context>

<pallas_src>
import jax
import jax.numpy as jnp
from jax.experimental import pallas as pl
from jax.experimental.pallas import tpu as pltpu


def _make_kernel(T, frame_tile, num_frame_tiles, use_roll):
    """Builds the per-(batch-block, frame-tile) kernel body."""

    def kernel(x_ref, y_ref, out_ref, carry_ref):
        t = pl.program_id(1)

        # Cast per-tile (VPU) so the DMA carries the native (possibly bf16)
        # dtype.  delta(y) - delta(x) == delta(y - x), so one subtract.
        d = y_ref[...].astype(jnp.float32) - x_ref[...].astype(jnp.float32)

        if use_roll:
            # prev[:, r, :] = d[:, r-1, :] for r >= 1 (row 0 wraps -> masked).
            prev = pltpu.roll(d, shift=1, axis=1)
            diff = d - prev
            row = jax.lax.broadcasted_iota(jnp.int32, (1, frame_tile, 1), 1)
            valid = row >= 1
            if T % frame_tile != 0:
                # Last frame tile may run past the real frame count.
                valid = jnp.logical_and(valid, t * frame_tile + row < T)
            sq = jnp.where(valid, diff * diff, 0.0)
        else:
            # Fallback for non-8-aligned frame extents (whole-T tiles only).
            diff = d[:, 1:, :] - d[:, :-1, :]
            sq = diff * diff

        # Lane-parallel partial sums: reduce batch + frame axes only; the
        # cross-lane reduction finishes in the wrapper.
        inner = jnp.sum(sq, axis=(0, 1), keepdims=True)  # (1, 1, F)

        if num_frame_tiles == 1:
            out_ref[...] = inner
        else:
            @pl.when(t == 0)
            def _():
                out_ref[...] = inner

            @pl.when(t > 0)
            def _():
                # Delta across the frame-tile boundary, against the carried
                # last frame of the previous tile.
                boundary = d[:, 0:1, :] - carry_ref[...]
                out_ref[...] = out_ref[...] + inner + jnp.sum(
                    boundary * boundary, axis=(0, 1), keepdims=True)

            carry_ref[...] = d[:, frame_tile - 1:frame_tile, :]

    return kernel


def log_stft_delta_loss(x_mag, y_mag, *, batch_tile=None, frame_tile=None):
    """Pallas implementation of LogSTFTDeltaLoss.forward.

    Args:
        x_mag: (B, #frames, #freq_bins) predicted magnitude spectrogram.
        y_mag: (B, #frames, #freq_bins) ground-truth magnitude spectrogram.
        batch_tile: optional batch-tile override (must divide B).
        frame_tile: optional frame-tile override (== #frames, or a multiple of
            the sublane granularity for the input dtype).

    Returns:
        scalar f32 loss = mean((y_delta - x_delta)**2)
    """
    assert x_mag.shape == y_mag.shape, "x_mag / y_mag shape mismatch"
    B, T, F = x_mag.shape
    assert T >= 2, "need at least 2 frames to compute deltas"

    itemsize = max(jnp.dtype(x_mag.dtype).itemsize,
                   jnp.dtype(y_mag.dtype).itemsize)
    sub = 8 * max(1, 4 // itemsize)  # sublane granularity for the input dtype

    # ---- chip-aware VMEM budget -----------------------------------------
    try:
        phys_vmem = int(pltpu.get_tpu_info().vmem_capacity_bytes)
    except Exception:  # conservative fallback (v7x-sized)
        phys_vmem = 64 * 1024 * 1024
    budget = min(32 * 1024 * 1024, phys_vmem // 2)

    def footprint(tb, tf):
        # 2 inputs x 2 pipeline buffers (native dtype) + ~3 f32 temporaries
        # (d, rolled/diff, masked squares) + 1 MiB slack.
        blk = tb * tf * F
        return blk * (4 * itemsize + 12) + (1 << 20)

    # ---- batch tile: keep >= min(B, 4) blocks for megacore + pipelining ---
    if batch_tile is None:
        max_tb = max(1, B // min(B, 4))
        tb = 1
        for cand in range(1, max_tb + 1):
            if B % cand == 0 and footprint(cand, T) <= budget:
                tb = cand
    else:
        tb = int(batch_tile)
    assert B % tb == 0, "batch_tile must divide the batch size"

    # ---- frame tile: only tile when a whole-T block blows the budget ------
    if frame_tile is None:
        if footprint(tb, T) <= budget or T <= sub:
            tf = T
        else:
            max_elems = max(1, (budget - (1 << 20)) // (4 * itemsize + 12))
            tf = max(sub, (max_elems // (tb * F)) // sub * sub)
            tf = min(tf, T)
    else:
        tf = int(frame_tile)
        assert tf == T or (tf % sub == 0 and tf <= T), (
            "frame_tile must equal #frames or be a multiple of the sublane "
            "granularity")

    num_frame_tiles = pl.cdiv(T, tf)
    num_batch_blocks = B // tb
    use_roll = (tf % 8) == 0

    kernel = _make_kernel(T, tf, num_frame_tiles, use_roll)

    vmem_limit = int(min((phys_vmem * 3) // 4,
                         max(footprint(tb, tf) + (2 << 20), 32 * 1024 * 1024)))

    partials = pl.pallas_call(
        kernel,
        out_shape=jax.ShapeDtypeStruct((num_batch_blocks, 1, F), jnp.float32),
        grid_spec=pltpu.PrefetchScalarGridSpec(
            num_scalar_prefetch=0,
            grid=(num_batch_blocks, num_frame_tiles),
            in_specs=[
                pl.BlockSpec((tb, tf, F), lambda b, t: (b, t, 0)),
                pl.BlockSpec((tb, tf, F), lambda b, t: (b, t, 0)),
            ],
            out_specs=pl.BlockSpec((1, 1, F), lambda b, t: (b, 0, 0)),
            scratch_shapes=[pltpu.VMEM((tb, 1, F), jnp.float32)],
        ),
        compiler_params=pltpu.CompilerParams(
            dimension_semantics=("parallel", "arbitrary"),
            vmem_limit_bytes=vmem_limit,
        ),
    )(x_mag, y_mag)

    total = jnp.sum(partials)
    n_elems = B * (T - 1) * F
    return (total / jnp.float32(n_elems)).astype(jnp.float32)


def _reference(x_mag, y_mag):
    x = x_mag.astype(jnp.float32)
    y = y_mag.astype(jnp.float32)
    y_delta = y[:, 1:, :] - y[:, :-1, :]
    x_delta = x[:, 1:, :] - x[:, :-1, :]
    return jnp.mean((y_delta - x_delta) ** 2)


if __name__ == "__main__":
    key = jax.random.PRNGKey(0)
    keys = jax.random.split(key, 4)

    def _case(k, shape, dtype, rtol, **kw):
        kx, ky = jax.random.split(k)
        x = jnp.abs(jax.random.normal(kx, shape, dtype=jnp.float32)).astype(dtype)
        y = jnp.abs(jax.random.normal(ky, shape, dtype=jnp.float32)).astype(dtype)
        out = jax.block_until_ready(log_stft_delta_loss(x, y, **kw))
        ref = _reference(x, y)
        assert jnp.allclose(out, ref, rtol=rtol, atol=1e-5), (shape, dtype, out, ref)

    # 1) Small f32 case: two batch blocks, single frame tile, roll path.
    _case(keys[0], (2, 16, 32), jnp.float32, 1e-5)

    # 2) bf16 inputs, 4 batch blocks, frame-tiled grid exercising the carry.
    _case(keys[1], (4, 32, 64), jnp.bfloat16, 2e-3, frame_tile=16)

    # 3) f32, frame tile that does not divide #frames (OOB-masked last tile).
    _case(keys[2], (2, 24, 48), jnp.float32, 1e-5, frame_tile=16)

    # 4) Non-8-aligned frame count -> slice fallback path.
    _case(keys[3], (3, 12, 20), jnp.float32, 1e-5)

    print("KERNEL_OK")
</pallas_src>

<mosaic_0001>
module attributes {stable_mosaic.version = 11 : i64} {
  func.func @kernel(%arg0: i32, %arg1: i32, %arg2: memref<1x16x32xf32, #tpu.memory_space<vmem>>, %arg3: memref<1x16x32xf32, #tpu.memory_space<vmem>>, %arg4: memref<1x1x32xf32, #tpu.memory_space<vmem>>, %arg5: memref<1x1x32xf32, #tpu.memory_space<vmem>>) attributes {dimension_semantics = [#tpu.dimension_semantics<parallel>, #tpu.dimension_semantics<arbitrary>], iteration_bounds = array<i64: 2, 1>, scalar_prefetch = 0 : i64, scratch_operands = 1 : i64, tpu.core_type = #tpu.core_type<tc>, window_params = [{transform_indices = @transform_0, window_bounds = array<i64: 1, 16, 32>}, {transform_indices = @transform_1, window_bounds = array<i64: 1, 16, 32>}, {transform_indices = @transform_2, window_bounds = array<i64: 1, 1, 32>}]} {
    %c0 = arith.constant 0 : index
    %c0_0 = arith.constant 0 : index
    %c0_1 = arith.constant 0 : index
    %0 = vector.load %arg3[%c0, %c0_0, %c0_1] : memref<1x16x32xf32, #tpu.memory_space<vmem>>, vector<1x16x32xf32>
    %c0_2 = arith.constant 0 : index
    %c0_3 = arith.constant 0 : index
    %c0_4 = arith.constant 0 : index
    %1 = vector.load %arg2[%c0_2, %c0_3, %c0_4] : memref<1x16x32xf32, #tpu.memory_space<vmem>>, vector<1x16x32xf32>
    %2 = arith.subf %0, %1 : vector<1x16x32xf32>
    %c1_i32 = arith.constant 1 : i32
    %3 = tpu.dynamic_rotate %2 by %c1_i32 dim 1 : vector<1x16x32xf32>, i32 -> vector<1x16x32xf32>
    %4 = arith.subf %2, %3 : vector<1x16x32xf32>
    %5 = tpu.iota {dimensions = array<i32: 1>} : vector<1x16x1xi32>
    %c1_i32_5 = arith.constant 1 : i32
    %6 = vector.broadcast %c1_i32_5 : i32 to vector<1x16x1xi32>
    %7 = arith.cmpi sge, %5, %6 : vector<1x16x1xi32>
    %8 = arith.mulf %4, %4 : vector<1x16x32xf32>
    %cst = arith.constant 0.000000e+00 : f32
    %9 = vector.shape_cast %7 : vector<1x16x1xi1> to vector<1x16x1xi1>
    %10 = vector.broadcast %9 : vector<1x16x1xi1> to vector<1x16x32xi1>
    %11 = vector.broadcast %cst : f32 to vector<1x16x32xf32>
    %12 = arith.select %10, %8, %11 : vector<1x16x32xi1>, vector<1x16x32xf32>
    %cst_6 = arith.constant dense<0.000000e+00> : vector<32xf32>
    %13 = vector.multi_reduction <add>, %12, %cst_6 [0, 1] : vector<1x16x32xf32> to vector<32xf32>
    %14 = vector.shape_cast %13 : vector<32xf32> to vector<1x1x32xf32>
    %c0_7 = arith.constant 0 : index
    %c0_8 = arith.constant 0 : index
    %c0_9 = arith.constant 0 : index
    %15 = vector.load %arg4[%c0_7, %c0_8, %c0_9] : memref<1x1x32xf32, #tpu.memory_space<vmem>>, vector<1x1x32xf32>
    tpu.vector_store %arg4[%c0_7, %c0_8, %c0_9], %14 {strides = array<i32>} : memref<1x1x32xf32, #tpu.memory_space<vmem>>, vector<1x1x32xf32>,
    return
  }
  func.func @transform_0(%arg0: i32, %arg1: i32) -> (i32, i32, i32) {
    %c0_i32 = arith.constant 0 : i32
    %c0_i32_0 = arith.constant 0 : i32
    return %arg0, %arg1, %c0_i32 : i32, i32, i32
  }
  func.func @transform_1(%arg0: i32, %arg1: i32) -> (i32, i32, i32) {
    %c0_i32 = arith.constant 0 : i32
    %c0_i32_0 = arith.constant 0 : i32
    return %arg0, %arg1, %c0_i32 : i32, i32, i32
  }
  func.func @transform_2(%arg0: i32, %arg1: i32) -> (i32, i32, i32) {
    %c0_i32 = arith.constant 0 : i32
    %c0_i32_0 = arith.constant 0 : i32
    %c0_i32_1 = arith.constant 0 : i32
    return %arg0, %c0_i32, %c0_i32_0 : i32, i32, i32
  }
}

</mosaic_0001>

<llo_original>
// kernel: tpu_custom_call.1
$region0: #{tpu_custom_call.1}
  #allocation0 [shape = 'u32[]', space=smem, size = 0x4, offset = 0x4, fixed_abs, tag = 'smem constant byte address 0x4 - core index']
  #allocation1 [shape = 'u32[72,128]{1,0:T(1,128)}', space=vmem, size = 0x9000, scoped, tag = 'internal scratch']
  #allocation2 [shape = 'f32[1,1,32]{2,1,0:T(1,128)}', space=vmem, size = 0x200, scoped, tag = 'scratch operand']
  %s0 = inlined_call_operand.hbm [shape: f32[2,16,32], index: 0, kind: input, shape index: {}]
  %s1 = inlined_call_operand.hbm [shape: f32[2,16,32], index: 1, kind: input, shape index: {}]
  %s2 = inlined_call_operand.hbm [shape: f32[2,1,32], index: 2, kind: output, shape index: {}]
  %s3 = sld [smem:[#allocation0]]
  $region49: #{tpu_custom_call.1} parent=0
    _
  %s5 = ssub.s32 1, %s3
  %s6 = scalar_select 0, %s5, %s3
  $region1: #{tpu_custom_call.1} parent=0
    #allocation3 [shape = 'u8[16384]{0}', space=vmem, size = 0x4000, scoped, tag = 'input window, operand 0']
    #allocation4 [shape = 's32[2]{0}', space=sflag, size = 0x8, scoped, tag = 'scoped memory for tpu_custom_call.1']
    #allocation5 [shape = 's32[2]{0}', space=sflag, size = 0x8, scoped, tag = 'scoped memory for tpu_custom_call.1']
    #allocation6 [shape = 'u8[16384]{0}', space=vmem, size = 0x4000, scoped, tag = 'input window, operand 1']
    #allocation7 [shape = 's32[2]{0}', space=sflag, size = 0x8, scoped, tag = 'scoped memory for tpu_custom_call.1']
    #allocation8 [shape = 'u8[1024]{0}', space=vmem, size = 0x400, scoped, tag = 'output window, operand 0']
    %7 = vsyncpa [#allocation4], 0
    %s8 = scalar_lea.sflag [#allocation4], 1
    %9 = vsyncpa %s8, 0
    %10 = vsyncpa [#allocation7], 0
    %s11 = scalar_lea.sflag [#allocation7], 1
    %12 = vsyncpa %s11, 0
    %13 = vsyncpa [#allocation5], 0
    %s14 = scalar_lea.sflag [#allocation5], 1
    %15 = vsyncpa %s14, 0
    loop: start=0, step=1, limit=4
    $region2: #{tpu_custom_call.1} parent=1 // loop_pre_header
      _
    $region3: #{tpu_custom_call.1} parent=1 // loop_header
      %s17 = sphi 0, %s21
      %p18 = scmp.ge.s32.totalorder %s17, 4
      %s24 = sphi 0, %s36
      %s25 = sphi 0, %s32
      %s26 = sphi 0, %s24
      %s27 = sphi 0, %s25
      %s28 = sphi 0, %s26
      %s29 = sphi 0, %s27
      %s41 = sphi 0, %s43
      %s44 = sphi 0, %s41
      %s45 = sphi 0, %s44
      %s61 = sphi 0, %s45
      %s69 = sphi 0, %s71
      %s72 = sphi 0, %s69
      %s73 = sphi 0, %s72
      %s89 = sphi 0, %s73
      %s95 = sphi 0, %s97
      %s98 = sphi 0, %s95
      %s99 = sphi 0, %s98
      %s115 = sphi 0, %s99
    $region4: #{tpu_custom_call.1} parent=1 // loop_header_branch
      %20 = sbr.rel (%p18) target = $region8
    $region5: #{tpu_custom_call.1} parent=1 // loop_body
      %s22 = ssub.s32 %s17, 1
      %s23 = ssub.s32 %s17, 2
      %s30 = sadd.s32 1, %s25
      %p31 = scmp.ge.s32.totalorder %s30, 1
      %s32 = scalar_select %p31, 0, %s30
      %s33 = sadd.s32 1, %s24
      %s34 = scalar_select %p31, %s33, %s24
      %p35 = scmp.ge.s32.totalorder %s34, 2
      %s36 = scalar_select %p35, 0, %s34
      %s37 = ssub.s32 %s24, %s36
      %s38 = ssub.s32 %s25, %s32
      %s39 = sor.u32 %s37, %s38
      %p40 = scmp.eq.s32.totalorder %s39, 0
      %s42 = sadd.s32 %s41, 1
      %s43 = scalar_select %p40, %s41, %s42
      %p46 = pneg %p40
      %p47 = scmp.eq.s32.totalorder %s17, 1
      %p48 = por %p46, %p47
      %p49 = scmp.ne.s32.totalorder %s41, %s44
      %p50 = scmp.eq.s32.totalorder %s17, 0
      %p51 = por %p49, %p50
      %p52 = scmp.ne.s32.totalorder %s41, %s44
      %p53 = scmp.eq.s32.totalorder %s22, 1
      %p54 = por %p52, %p53
      %p55 = scmp.ne.s32.totalorder %s44, %s45
      %p56 = scmp.eq.s32.totalorder %s22, 0
      %p57 = por %p55, %p56
      %p58 = scmp.ne.s32.totalorder %s44, %s45
      %p59 = scmp.eq.s32.totalorder %s23, 1
      %p60 = por %p58, %p59
      %p62 = scmp.ne.s32.totalorder %s45, %s61
      %p63 = scmp.eq.s32.totalorder %s23, 0
      %p64 = por %p62, %p63
      %s65 = ssub.s32 %s24, %s36
      %s66 = ssub.s32 %s25, %s32
      %s67 = sor.u32 %s65, %s66
      %p68 = scmp.eq.s32.totalorder %s67, 0
      %s70 = sadd.s32 %s69, 1
      %s71 = scalar_select %p68, %s69, %s70
      %p74 = pneg %p68
      %p75 = scmp.eq.s32.totalorder %s17, 1
      %p76 = por %p74, %p75
      %p77 = scmp.ne.s32.totalorder %s69, %s72
      %p78 = scmp.eq.s32.totalorder %s17, 0
      %p79 = por %p77, %p78
      %p80 = scmp.ne.s32.totalorder %s69, %s72
      %p81 = scmp.eq.s32.totalorder %s22, 1
      %p82 = por %p80, %p81
      %p83 = scmp.ne.s32.totalorder %s72, %s73
      %p84 = scmp.eq.s32.totalorder %s22, 0
      %p85 = por %p83, %p84
      %p86 = scmp.ne.s32.totalorder %s72, %s73
      %p87 = scmp.eq.s32.totalorder %s23, 1
      %p88 = por %p86, %p87
      %p90 = scmp.ne.s32.totalorder %s73, %s89
      %p91 = scmp.eq.s32.totalorder %s23, 0
      %p92 = por %p90, %p91
      %s93 = ssub.s32 %s24, %s36
      %p94 = scmp.eq.s32.totalorder %s93, 0
      %s96 = sadd.s32 %s95, 1
      %s97 = scalar_select %p94, %s95, %s96
      %p100 = pneg %p94
      %p101 = scmp.eq.s32.totalorder %s17, 1
      %p102 = por %p100, %p101
      %p103 = scmp.ne.s32.totalorder %s95, %s98
      %p104 = scmp.eq.s32.totalorder %s17, 0
      %p105 = por %p103, %p104
      %p106 = scmp.ne.s32.totalorder %s95, %s98
      %p107 = scmp.eq.s32.totalorder %s22, 1
      %p108 = por %p106, %p107
      %p109 = scmp.ne.s32.totalorder %s98, %s99
      %p110 = scmp.eq.s32.totalorder %s22, 0
      %p111 = por %p109, %p110
      %p112 = scmp.ne.s32.totalorder %s98, %s99
      %p113 = scmp.eq.s32.totalorder %s23, 1
      %p114 = por %p112, %p113
      %p116 = scmp.ne.s32.totalorder %s99, %s115
      %p117 = scmp.eq.s32.totalorder %s23, 0
      %p118 = por %p116, %p117
      %p119 = scmp.le.s32.totalorder 1, %s17
      %p120 = scmp.lt.s32.totalorder %s17, 3
      %p121 = pnand %p119, %p120
      %p122 = pneg %p121
      // Predicated region
      $region9: #{tpu_custom_call.1} parent=5 // pred_check
        _
      $region10: #{tpu_custom_call.1} parent=5 // pred_check_branch
        %124 = sbr.rel (%p121) target = $region12
      $region11: #{tpu_custom_call.1} parent=5 // pred_region
        %s125 = ssub.s32 %s17, 1
      $region12: #{tpu_custom_call.1} parent=5 // pred_fallthru
        _
      %p126 = scmp.lt.s32.totalorder %s17, 2
      // Predicated region
      $region13: #{tpu_custom_call.1} parent=5 // pred_check
        %p127 = pneg %p126
      $region14: #{tpu_custom_call.1} parent=5 // pred_check_branch
        %129 = sbr.rel (%p127) target = $region16
      $region15: #{tpu_custom_call.1} parent=5 // pred_region
        // Predicated region
        $region17: #{tpu_custom_call.1} parent=15 // pred_check
          %p130 = pneg %p51
        $region18: #{tpu_custom_call.1} parent=15 // pred_check_branch
          %132 = sbr.rel (%p130) target = $region20
        $region19: #{tpu_custom_call.1} parent=15 // pred_region
          %s133 = sand.u32 %s41, 1
          %s134 = scalar_lea.sflag [#allocation4], %s133
          %s135 = sand.u32 %s41, 1
          %s136 = smul.addr %s135, 16
          %s137 = scalar_lea.vmem [#allocation3], %s136
          %s138 = smul.u32 2, %s25
          %140 = vsyncadd %s134, 0
          %s141 = smul.addr %s24, 2
          %s142 = sadd.s32 %s138, %s141
          %s143 = smul.addr %s142, 8
          %s144 = scalar_lea.hbm %s0, %s143
          %s145 = sshll.u32 %s144, 4
          %s146 = int_to_ptr.hbm [resolvable:$true] %s145
          %s147 = sshll.u32 %s137, 4
          %s148 = int_to_ptr.vmem [resolvable:$true] %s147
          %153 = dma.hbm_to_vmem [thread:$0]  %s146, 256, %s148, %s134, 128, 128, 8
        $region20: #{tpu_custom_call.1} parent=15 // pred_fallthru
          _
        // Predicated region
        $region21: #{tpu_custom_call.1} parent=15 // pred_check
          %p154 = pneg %p79
        $region22: #{tpu_custom_call.1} parent=15 // pred_check_branch
          %156 = sbr.rel (%p154) target = $region24
        $region23: #{tpu_custom_call.1} parent=15 // pred_region
          %s157 = sand.u32 %s69, 1
          %s158 = scalar_lea.sflag [#allocation7], %s157
          %s159 = sand.u32 %s69, 1
          %s160 = smul.addr %s159, 16
          %s161 = scalar_lea.vmem [#allocation6], %s160
          %s162 = smul.u32 2, %s25
          %164 = vsyncadd %s158, 0
          %s165 = smul.addr %s24, 2
          %s166 = sadd.s32 %s162, %s165
          %s167 = smul.addr %s166, 8
          %s168 = scalar_lea.hbm %s1, %s167
          %s169 = sshll.u32 %s168, 4
          %s170 = int_to_ptr.hbm [resolvable:$true] %s169
          %s171 = sshll.u32 %s161, 4
          %s172 = int_to_ptr.vmem [resolvable:$true] %s171
          %177 = dma.hbm_to_vmem [thread:$0]  %s170, 256, %s172, %s158, 128, 128, 8
        $region24: #{tpu_custom_call.1} parent=15 // pred_fallthru
          _
      $region16: #{tpu_custom_call.1} parent=5 // pred_fallthru
        _
      %p178 = scmp.le.s32.totalorder 1, %s17
      %p179 = scmp.lt.s32.totalorder %s17, 3
      %p180 = pnand %p178, %p179
      %p181 = pneg %p180
      // Predicated region
      $region25: #{tpu_custom_call.1} parent=5 // pred_check
        _
      $region26: #{tpu_custom_call.1} parent=5 // pred_check_branch
        %183 = sbr.rel (%p180) target = $region28
      $region27: #{tpu_custom_call.1} parent=5 // pred_region
        %s184 = ssub.s32 %s17, 1
        %s185 = sand.u32 %s44, 1
        %s186 = scalar_lea.sflag [#allocation4], %s185
        %s187 = sand.u32 %s44, 1
        %s188 = smul.addr %s187, 16
        %s189 = scalar_lea.vmem [#allocation3], %s188
        // Predicated region
        $region29: #{tpu_custom_call.1} parent=27 // pred_check
          %p190 = pneg %p57
        $region30: #{tpu_custom_call.1} parent=27 // pred_check_branch
          %192 = sbr.rel (%p190) target = $region32
        $region31: #{tpu_custom_call.1} parent=27 // pred_region
          %194 = dma.done %s186, 256
        $region32: #{tpu_custom_call.1} parent=27 // pred_fallthru
          _
        %s195 = sand.u32 %s72, 1
        %s196 = scalar_lea.sflag [#allocation7], %s195
        %s197 = sand.u32 %s72, 1
        %s198 = smul.addr %s197, 16
        %s199 = scalar_lea.vmem [#allocation6], %s198
        // Predicated region
        $region33: #{tpu_custom_call.1} parent=27 // pred_check
          %p200 = pneg %p85
        $region34: #{tpu_custom_call.1} parent=27 // pred_check_branch
          %202 = sbr.rel (%p200) target = $region36
        $region35: #{tpu_custom_call.1} parent=27 // pred_region
          %204 = dma.done %s196, 256
        $region36: #{tpu_custom_call.1} parent=27 // pred_fallthru
          _
        %s205 = sand.u32 %s44, 1
        %s206 = scalar_lea.sflag [#allocation4], %s205
        %s207 = sand.u32 %s44, 1
        %s208 = smul.addr %s207, 16
        %s209 = scalar_lea.vmem [#allocation3], %s208
        %p210 = pneg %p57
        %p211 = pneg %p54
        %s212 = sand.u32 %s72, 1
        %s213 = scalar_lea.sflag [#allocation7], %s212
        %s214 = sand.u32 %s72, 1
        %s215 = smul.addr %s214, 16
        %s216 = scalar_lea.vmem [#allocation6], %s215
        %p217 = pneg %p85
        %p218 = pneg %p82
        %p219 = pneg %p111
        %p220 = pneg %p108
        %s221 = sand.u32 %s98, 1
        %s222 = scalar_lea.sflag [#allocation5], %s221
        %s223 = sand.u32 %s98, 1
        %s224 = scalar_lea.vmem [#allocation8], %s223
        %s225 = smul.u32 2, %s27
        %s226 = smul.u32 2, %s27
        %v227 = vld [vmem:[%s199] sm:$0xff]
        %v228 = vld [vmem:[%s199 + $0x8] sm:$0xff]
        %v229 = vld [vmem:[%s189] sm:$0xff]
        %v230 = vld [vmem:[%s189 + $0x8] sm:$0xff]
        %v231 = vsub.f32 %v227, %v229
        %v232 = vsub.f32 %v228, %v230
        %v233 = vrot.slane %v231, 7
        %v234 = vrot.slane %v232, 7
        %v235 = vlaneseq
        %v236 = vshrl.u32 %v235, 7
        %vm237 = vcmp.lt.s32.totalorder %v236, 1
        %v238 = vsel %vm237, %v233, %v234
        %v239 = vsel %vm237, %v234, %v233
        %v240 = vsub.f32 %v231, %v239
        %v241 = vsub.f32 %v232, %v238
        %v242 = vadd.s32 %v236, 8
        %vm243 = vcmp.ge.s32.totalorder %v236, 1
        %vm244 = vcmp.ge.s32.totalorder %v242, 1
        %v245 = vmul.f32 %v240, %v240
        %v246 = vmul.f32 %v241, %v241
        %v247 = vsel %vm243, 1, 0
        %v248 = vsel %vm244, 1, 0
        %vm249 = vcmp.eq.s32.totalorder %v247, 1
        %vm250 = vcmp.eq.s32.totalorder %v248, 1
        %v251 = vsel %vm249, %v245, 0.0
        %v252 = vsel %vm250, %v246, 0.0
        %vm253 = vcmask 261120
        %v254 = vsel %vm253, %v251, 0.0
        %v255 = vsel %vm253, %v252, 0.0
        %v256 = vadd.f32 %v254, %v255
        %v257 = vrot.slane %v256, 4
        %v258 = vadd.f32 %v256, %v257
        %v259 = vrot.slane %v258, 2
        %v260 = vadd.f32 %v258, %v259
        %v261 = vrot.slane %v260, 1
        %v262 = vadd.f32 %v260, %v261
        %vm263 = vcmask 253952
        %264 = vst.msk [vmem:[%s224] sm:$0x1] %vm263, %v262
        %s265 = sand.u32 %s98, 1
        %s266 = scalar_lea.sflag [#allocation5], %s265
        %s267 = sand.u32 %s98, 1
        %s268 = scalar_lea.vmem [#allocation8], %s267
        // Predicated region
        $region37: #{tpu_custom_call.1} parent=27 // pred_check
          %p269 = pneg %p108
        $region38: #{tpu_custom_call.1} parent=27 // pred_check_branch
          %271 = sbr.rel (%p269) target = $region40
        $region39: #{tpu_custom_call.1} parent=27 // pred_region
          %273 = vsyncadd %s266, 0
          %s274 = scalar_lea.hbm %s2, %s26
          %s276 = sshll.u32 %s268, 4
          %s277 = int_to_ptr.vmem [resolvable:$true] %s276
          %s278 = sshll.u32 %s274, 4
          %s279 = int_to_ptr.hbm [resolvable:$true] %s278
          %281 = dma.vmem_to_hbm [thread:$0]  %s277, 16, %s279, %s266
        $region40: #{tpu_custom_call.1} parent=27 // pred_fallthru
          _
      $region28: #{tpu_custom_call.1} parent=5 // pred_fallthru
        _
      %p282 = scmp.le.s32.totalorder 2, %s17
      // Predicated region
      $region41: #{tpu_custom_call.1} parent=5 // pred_check
        %p283 = pneg %p282
      $region42: #{tpu_custom_call.1} parent=5 // pred_check_branch
        %285 = sbr.rel (%p283) target = $region44
      $region43: #{tpu_custom_call.1} parent=5 // pred_region
        %s286 = ssub.s32 %s17, 2
        // Predicated region
        $region45: #{tpu_custom_call.1} parent=43 // pred_check
          %p287 = pneg %p114
        $region46: #{tpu_custom_call.1} parent=43 // pred_check_branch
          %289 = sbr.rel (%p287) target = $region48
        $region47: #{tpu_custom_call.1} parent=43 // pred_region
          %s290 = sand.u32 %s99, 1
          %s291 = scalar_lea.sflag [#allocation5], %s290
          %s292 = sand.u32 %s99, 1
          %s293 = scalar_lea.vmem [#allocation8], %s292
          %295 = dma.done %s291, 16
        $region48: #{tpu_custom_call.1} parent=43 // pred_fallthru
          _
      $region44: #{tpu_custom_call.1} parent=5 // pred_fallthru
        _
    $region6: #{tpu_custom_call.1} parent=1 // loop_footer
      %s21 = sadd.s32 1, %s17
    $region7: #{tpu_custom_call.1} parent=1 // loop_footer_branch
      %16 = sbr.rel target = $region3
    $region8: #{tpu_custom_call.1} parent=1 // loop_exit
      _
    %296 = vsyncpa [#allocation4], 1
    %s297 = scalar_lea.sflag [#allocation4], 1
    %298 = vsyncpa %s297, 1
    %299 = vsyncpa [#allocation7], 1
    %s300 = scalar_lea.sflag [#allocation7], 1
    %301 = vsyncpa %s300, 1
    %302 = vsyncpa [#allocation5], 1
    %s303 = scalar_lea.sflag [#allocation5], 1
    %304 = vsyncpa %s303, 1

</llo_original>
